<compile_context>
chip_gen: v5e
topology: v5e:2x2
jax: 0.10.0
libtpu: 0.0.40
codegen_flags: <defaults>
</compile_context>

<pallas_src>
import functools

import jax
import jax.numpy as jnp
from jax.experimental import pallas as pl
from jax.experimental.pallas import tpu as pltpu

LANE = 128
SUBLANE = 8
NEG_SLOPE = 0.01
BN_EPS = 1e-5


def _round_up(x, m):
    return (x + m - 1) // m * m


def _pad2(x, rows, cols):
    r, c = x.shape
    return jnp.pad(x, ((0, rows - r), (0, cols - c)))


# ----------------------------- fused Pallas kernel -----------------------------

def _hetero_gnn_kernel(
    # dense adjacency A[dst, src]
    a_dd_ref, a_ds_ref, a_sd_ref,
    # node features
    xd_ref, xs_ref,
    # layer 1 fused weights: [W_rel_dd | W_rel_ds | W_root_drug], [W_rel_sd | W_root_se]
    w1_xd_ref, w1_xs_ref, b1_d_ref, b1_s_ref,
    # layer 2 fused weights
    w2_xd_ref, w2_xs_ref, b2_d_ref, b2_s_ref,
    # shared batchnorm affine
    gamma_ref, beta_ref,
    # outputs
    drug_out_ref, se_out_ref,
    *, n_drug, n_se, hp,
):
    f32 = jnp.float32

    def dot(a, b):
        return jnp.dot(a, b, preferred_element_type=f32)

    def leaky(x):
        return jnp.where(x > 0, x, NEG_SLOPE * x)

    a_dd = a_dd_ref[...]
    a_ds = a_ds_ref[...]
    a_sd = a_sd_ref[...]

    def hetero_layer(src_d, src_s, w_xd_ref, w_xs_ref, b_d_ref, b_s_ref):
        # One wide projection per source tensor (lane-concatenated weights),
        # then one adjacency matmul per relation.  Slices are 128-lane aligned.
        p_d = dot(src_d, w_xd_ref[...])          # (nd, 3*hp)
        p_s = dot(src_s, w_xs_ref[...])          # (ns, 2*hp)
        drug = (dot(a_dd, p_d[:, 0 * hp:1 * hp])     # ('drug','interacts','drug')
                + dot(a_sd, p_s[:, 0 * hp:1 * hp])   # ('side_effect','caused_by','drug')
                + p_d[:, 2 * hp:3 * hp]              # merged root on x_drug
                + b_d_ref[...])
        se = (dot(a_ds, p_d[:, 1 * hp:2 * hp])       # ('drug','causes','side_effect')
              + p_s[:, 1 * hp:2 * hp]                # root on x_se
              + b_s_ref[...])
        return leaky(drug), leaky(se)

    # ---- conv1 + LeakyReLU, conv2 + LeakyReLU -------------------------------
    drug1, se1 = hetero_layer(xd_ref[...], xs_ref[...],
                              w1_xd_ref, w1_xs_ref, b1_d_ref, b1_s_ref)
    drug2, se2 = hetero_layer(drug1, se1,
                              w2_xd_ref, w2_xs_ref, b2_d_ref, b2_s_ref)

    # ---- feature_norm: BatchNorm1d, training-mode batch statistics ----------
    gamma = gamma_ref[...]
    beta = beta_ref[...]

    def batchnorm(x, n_valid):
        rows = jax.lax.broadcasted_iota(jnp.int32, x.shape, 0)
        xm = jnp.where(rows < n_valid, x, 0.0)       # mask padded rows out of stats
        inv_n = 1.0 / n_valid
        mean = jnp.sum(xm, axis=0, keepdims=True) * inv_n
        mean_sq = jnp.sum(xm * xm, axis=0, keepdims=True) * inv_n
        var = jnp.maximum(mean_sq - mean * mean, 0.0)  # biased variance (PyTorch BN)
        inv = jax.lax.rsqrt(var + BN_EPS)
        return (x - mean) * (inv * gamma) + beta

    drug_out_ref[...] = batchnorm(drug2, n_drug)
    se_out_ref[...] = batchnorm(se2, n_se)


# ----------------------------- wrapper -----------------------------

def hetero_gnn_forward(x_drug, x_se, A_dd, A_ds, A_sd, params):
    n_drug, f_drug = x_drug.shape
    n_se, f_se = x_se.shape
    hidden = params['c1_dd'][0].shape[1]

    # lane-dense padding: rows -> multiple of 8 sublanes, features -> multiple of 128 lanes
    ndp = _round_up(n_drug, SUBLANE)
    nsp = _round_up(n_se, SUBLANE)
    fdp = _round_up(f_drug, LANE)
    fsp = _round_up(f_se, LANE)
    hp = _round_up(hidden, LANE)

    p = params
    w1_rel_dd, w1_root_dd, b1_dd = p['c1_dd']
    w1_rel_ds, w1_root_ds, b1_ds = p['c1_ds']
    w1_rel_sd, w1_root_sd, b1_sd = p['c1_sd']
    w2_rel_dd, w2_root_dd, b2_dd = p['c2_dd']
    w2_rel_ds, w2_root_ds, b2_ds = p['c2_ds']
    w2_rel_sd, w2_root_sd, b2_sd = p['c2_sd']

    # merge root transforms / biases of relations sharing the 'drug' destination
    w1_root_d = w1_root_dd + w1_root_sd
    w2_root_d = w2_root_dd + w2_root_sd
    b1_d = (b1_dd + b1_sd).reshape(1, hidden)
    b2_d = (b2_dd + b2_sd).reshape(1, hidden)
    b1_s = b1_ds.reshape(1, hidden)
    b2_s = b2_ds.reshape(1, hidden)

    # lane-concatenated projection weights (each block zero-padded to hp lanes)
    w1_xd = jnp.concatenate([_pad2(w1_rel_dd, fdp, hp),
                             _pad2(w1_rel_ds, fdp, hp),
                             _pad2(w1_root_d, fdp, hp)], axis=1)   # (fdp, 3*hp)
    w1_xs = jnp.concatenate([_pad2(w1_rel_sd, fsp, hp),
                             _pad2(w1_root_ds, fsp, hp)], axis=1)  # (fsp, 2*hp)
    w2_xd = jnp.concatenate([_pad2(w2_rel_dd, hp, hp),
                             _pad2(w2_rel_ds, hp, hp),
                             _pad2(w2_root_d, hp, hp)], axis=1)    # (hp, 3*hp)
    w2_xs = jnp.concatenate([_pad2(w2_rel_sd, hp, hp),
                             _pad2(w2_root_ds, hp, hp)], axis=1)   # (hp, 2*hp)

    inputs = [
        _pad2(A_dd, ndp, ndp), _pad2(A_ds, nsp, ndp), _pad2(A_sd, ndp, nsp),
        _pad2(x_drug, ndp, fdp), _pad2(x_se, nsp, fsp),
        w1_xd, w1_xs, _pad2(b1_d, 1, hp), _pad2(b1_s, 1, hp),
        w2_xd, w2_xs, _pad2(b2_d, 1, hp), _pad2(b2_s, 1, hp),
        _pad2(p['bn_gamma'].reshape(1, hidden), 1, hp),
        _pad2(p['bn_beta'].reshape(1, hidden), 1, hp),
    ]

    def full_spec(arr):
        return pl.BlockSpec(tuple(int(s) for s in arr.shape), lambda i: (0, 0))

    kernel = functools.partial(_hetero_gnn_kernel, n_drug=n_drug, n_se=n_se, hp=hp)

    drug_p, se_p = pl.pallas_call(
        kernel,
        grid=(1,),  # everything fits in VMEM; single fused program.
        # TODO(synk): for realistic graph sizes, add row-tile / src-reduction grid axes
        # ("parallel" semantics for megacore) and an edge-list gather path instead of the
        # dense adjacency matmul.
        out_shape=(jax.ShapeDtypeStruct((ndp, hp), jnp.float32),
                   jax.ShapeDtypeStruct((nsp, hp), jnp.float32)),
        in_specs=[full_spec(a) for a in inputs],
        out_specs=(pl.BlockSpec((ndp, hp), lambda i: (0, 0)),
                   pl.BlockSpec((nsp, hp), lambda i: (0, 0))),
        compiler_params=pltpu.CompilerParams(dimension_semantics=("arbitrary",)),
    )(*inputs)

    return {'drug': drug_p[:n_drug, :hidden], 'side_effect': se_p[:n_se, :hidden]}


# ----------------------------- params / glue -----------------------------

def init_params(key, f_drug, f_se, hidden):
    ks = jax.random.split(key, 20)

    def lin(k, fan_in, fan_out):
        return (jax.random.normal(k, (fan_in, fan_out), jnp.float32)
                / jnp.sqrt(jnp.float32(fan_in)))

    def bias(k):
        return 0.1 * jax.random.normal(k, (hidden,), jnp.float32)

    p = {}
    # (W_rel, W_root, b_rel) per relation
    p['c1_dd'] = (lin(ks[0], f_drug, hidden), lin(ks[1], f_drug, hidden), bias(ks[12]))
    p['c1_ds'] = (lin(ks[2], f_drug, hidden), lin(ks[3], f_se, hidden), bias(ks[13]))
    p['c1_sd'] = (lin(ks[4], f_se, hidden), lin(ks[5], f_drug, hidden), bias(ks[14]))
    p['c2_dd'] = (lin(ks[6], hidden, hidden), lin(ks[7], hidden, hidden), bias(ks[15]))
    p['c2_ds'] = (lin(ks[8], hidden, hidden), lin(ks[9], hidden, hidden), bias(ks[16]))
    p['c2_sd'] = (lin(ks[10], hidden, hidden), lin(ks[11], hidden, hidden), bias(ks[17]))
    p['bn_gamma'] = jnp.ones((hidden,), jnp.float32)
    p['bn_beta'] = jnp.zeros((hidden,), jnp.float32)
    return p


def dense_adj(src, dst, n_src, n_dst):
    # glue: dense adjacency A[dst, src] (+1 per edge, multi-edges accumulate)
    A = jnp.zeros((n_dst, n_src), jnp.float32)
    return A.at[dst, src].add(1.0)


def _reference_forward(x_drug, x_se, A_dd, A_ds, A_sd, params):
    # pure-JAX reference in the un-merged / un-fused form (checks the fusion algebra)
    def graphconv(A, xs, xd, w_rel, w_root, b):
        return (A @ xs) @ w_rel + xd @ w_root + b

    def leaky(x):
        return jnp.where(x > 0, x, NEG_SLOPE * x)

    def bn(x, g, b):
        mean = jnp.mean(x, axis=0, keepdims=True)
        var = jnp.mean((x - mean) ** 2, axis=0, keepdims=True)
        return (x - mean) * jax.lax.rsqrt(var + BN_EPS) * g + b

    p = params
    y_dd = graphconv(A_dd, x_drug, x_drug, *p['c1_dd'])
    y_ds = graphconv(A_ds, x_drug, x_se, *p['c1_ds'])
    y_sd = graphconv(A_sd, x_se, x_drug, *p['c1_sd'])
    drug1, se1 = leaky(y_dd + y_sd), leaky(y_ds)
    y_dd2 = graphconv(A_dd, drug1, drug1, *p['c2_dd'])
    y_ds2 = graphconv(A_ds, drug1, se1, *p['c2_ds'])
    y_sd2 = graphconv(A_sd, se1, drug1, *p['c2_sd'])
    drug2, se2 = leaky(y_dd2 + y_sd2), leaky(y_ds2)
    return {'drug': bn(drug2, p['bn_gamma'], p['bn_beta']),
            'side_effect': bn(se2, p['bn_gamma'], p['bn_beta'])}


# ----------------------------- main -----------------------------

if __name__ == "__main__":
    key = jax.random.PRNGKey(0)
    keys = jax.random.split(key, 10)

    N_DRUG, N_SE = 16, 24
    F_DRUG, F_SE = 16, 12
    HIDDEN = 32
    E_DD, E_DS, E_SD = 40, 48, 48

    x_drug = jax.random.normal(keys[0], (N_DRUG, F_DRUG), jnp.float32)
    x_se = jax.random.normal(keys[1], (N_SE, F_SE), jnp.float32)

    src_dd = jax.random.randint(keys[2], (E_DD,), 0, N_DRUG)
    dst_dd = jax.random.randint(keys[3], (E_DD,), 0, N_DRUG)
    src_ds = jax.random.randint(keys[4], (E_DS,), 0, N_DRUG)
    dst_ds = jax.random.randint(keys[5], (E_DS,), 0, N_SE)
    src_sd = jax.random.randint(keys[6], (E_SD,), 0, N_SE)
    dst_sd = jax.random.randint(keys[7], (E_SD,), 0, N_DRUG)

    A_dd = dense_adj(src_dd, dst_dd, N_DRUG, N_DRUG)   # ('drug','interacts','drug')
    A_ds = dense_adj(src_ds, dst_ds, N_DRUG, N_SE)     # ('drug','causes','side_effect')
    A_sd = dense_adj(src_sd, dst_sd, N_SE, N_DRUG)     # ('side_effect','caused_by','drug')

    params = init_params(keys[8], F_DRUG, F_SE, HIDDEN)

    fwd = jax.jit(hetero_gnn_forward)
    out = fwd(x_drug, x_se, A_dd, A_ds, A_sd, params)
    jax.block_until_ready(out)

    assert out['drug'].shape == (N_DRUG, HIDDEN)
    assert out['side_effect'].shape == (N_SE, HIDDEN)

    ref = _reference_forward(x_drug, x_se, A_dd, A_ds, A_sd, params)
    assert jnp.allclose(out['drug'], ref['drug'], rtol=1e-2, atol=1e-2)
    assert jnp.allclose(out['side_effect'], ref['side_effect'], rtol=1e-2, atol=1e-2)

    print("KERNEL_OK")
</pallas_src>

<mosaic_0001>
module attributes {stable_mosaic.version = 11 : i64} {
  func.func @_hetero_gnn_kernel(%arg0: i32, %arg1: memref<16x16xf32, #tpu.memory_space<vmem>>, %arg2: memref<24x16xf32, #tpu.memory_space<vmem>>, %arg3: memref<16x24xf32, #tpu.memory_space<vmem>>, %arg4: memref<16x128xf32, #tpu.memory_space<vmem>>, %arg5: memref<24x128xf32, #tpu.memory_space<vmem>>, %arg6: memref<128x384xf32, #tpu.memory_space<vmem>>, %arg7: memref<128x256xf32, #tpu.memory_space<vmem>>, %arg8: memref<1x128xf32, #tpu.memory_space<vmem>>, %arg9: memref<1x128xf32, #tpu.memory_space<vmem>>, %arg10: memref<128x384xf32, #tpu.memory_space<vmem>>, %arg11: memref<128x256xf32, #tpu.memory_space<vmem>>, %arg12: memref<1x128xf32, #tpu.memory_space<vmem>>, %arg13: memref<1x128xf32, #tpu.memory_space<vmem>>, %arg14: memref<1x128xf32, #tpu.memory_space<vmem>>, %arg15: memref<1x128xf32, #tpu.memory_space<vmem>>, %arg16: memref<16x128xf32, #tpu.memory_space<vmem>>, %arg17: memref<24x128xf32, #tpu.memory_space<vmem>>) attributes {dimension_semantics = [#tpu.dimension_semantics<arbitrary>], iteration_bounds = array<i64: 1>, scalar_prefetch = 0 : i64, scratch_operands = 0 : i64, tpu.core_type = #tpu.core_type<tc>, window_params = [{pipeline_mode = #tpu.pipeline_mode<synchronous>, transform_indices = @transform_0, window_bounds = array<i64: 16, 16>}, {pipeline_mode = #tpu.pipeline_mode<synchronous>, transform_indices = @transform_1, window_bounds = array<i64: 24, 16>}, {pipeline_mode = #tpu.pipeline_mode<synchronous>, transform_indices = @transform_2, window_bounds = array<i64: 16, 24>}, {pipeline_mode = #tpu.pipeline_mode<synchronous>, transform_indices = @transform_3, window_bounds = array<i64: 16, 128>}, {pipeline_mode = #tpu.pipeline_mode<synchronous>, transform_indices = @transform_4, window_bounds = array<i64: 24, 128>}, {pipeline_mode = #tpu.pipeline_mode<synchronous>, transform_indices = @transform_5, window_bounds = array<i64: 128, 384>}, {pipeline_mode = #tpu.pipeline_mode<synchronous>, transform_indices = @transform_6, window_bounds = array<i64: 128, 256>}, {pipeline_mode = #tpu.pipeline_mode<synchronous>, transform_indices = @transform_7, window_bounds = array<i64: 1, 128>}, {pipeline_mode = #tpu.pipeline_mode<synchronous>, transform_indices = @transform_8, window_bounds = array<i64: 1, 128>}, {pipeline_mode = #tpu.pipeline_mode<synchronous>, transform_indices = @transform_9, window_bounds = array<i64: 128, 384>}, {pipeline_mode = #tpu.pipeline_mode<synchronous>, transform_indices = @transform_10, window_bounds = array<i64: 128, 256>}, {pipeline_mode = #tpu.pipeline_mode<synchronous>, transform_indices = @transform_11, window_bounds = array<i64: 1, 128>}, {pipeline_mode = #tpu.pipeline_mode<synchronous>, transform_indices = @transform_12, window_bounds = array<i64: 1, 128>}, {pipeline_mode = #tpu.pipeline_mode<synchronous>, transform_indices = @transform_13, window_bounds = array<i64: 1, 128>}, {pipeline_mode = #tpu.pipeline_mode<synchronous>, transform_indices = @transform_14, window_bounds = array<i64: 1, 128>}, {pipeline_mode = #tpu.pipeline_mode<synchronous>, transform_indices = @transform_15, window_bounds = array<i64: 16, 128>}, {pipeline_mode = #tpu.pipeline_mode<synchronous>, transform_indices = @transform_16, window_bounds = array<i64: 24, 128>}]} {
    %c0 = arith.constant 0 : index
    %c0_0 = arith.constant 0 : index
    %0 = vector.load %arg1[%c0, %c0_0] : memref<16x16xf32, #tpu.memory_space<vmem>>, vector<16x16xf32>
    %c0_1 = arith.constant 0 : index
    %c0_2 = arith.constant 0 : index
    %1 = vector.load %arg2[%c0_1, %c0_2] : memref<24x16xf32, #tpu.memory_space<vmem>>, vector<24x16xf32>
    %c0_3 = arith.constant 0 : index
    %c0_4 = arith.constant 0 : index
    %2 = vector.load %arg3[%c0_3, %c0_4] : memref<16x24xf32, #tpu.memory_space<vmem>>, vector<16x24xf32>
    %c0_5 = arith.constant 0 : index
    %c0_6 = arith.constant 0 : index
    %3 = vector.load %arg4[%c0_5, %c0_6] : memref<16x128xf32, #tpu.memory_space<vmem>>, vector<16x128xf32>
    %c0_7 = arith.constant 0 : index
    %c0_8 = arith.constant 0 : index
    %4 = vector.load %arg5[%c0_7, %c0_8] : memref<24x128xf32, #tpu.memory_space<vmem>>, vector<24x128xf32>
    %c0_9 = arith.constant 0 : index
    %c0_10 = arith.constant 0 : index
    %5 = vector.load %arg6[%c0_9, %c0_10] : memref<128x384xf32, #tpu.memory_space<vmem>>, vector<128x384xf32>
    %cst = arith.constant dense<0.000000e+00> : vector<16x384xf32>
    %6 = tpu.matmul %3, %5, %cst {dimension_numbers = #tpu.dot_dimension_numbers<[1], [0], [0], [1], [0, 0, 1, 1], [], []>} : vector<16x128xf32>, vector<128x384xf32>, vector<16x384xf32> -> vector<16x384xf32>
    %c0_11 = arith.constant 0 : index
    %c0_12 = arith.constant 0 : index
    %7 = vector.load %arg7[%c0_11, %c0_12] : memref<128x256xf32, #tpu.memory_space<vmem>>, vector<128x256xf32>
    %cst_13 = arith.constant dense<0.000000e+00> : vector<24x256xf32>
    %8 = tpu.matmul %4, %7, %cst_13 {dimension_numbers = #tpu.dot_dimension_numbers<[1], [0], [0], [1], [0, 0, 1, 1], [], []>} : vector<24x128xf32>, vector<128x256xf32>, vector<24x256xf32> -> vector<24x256xf32>
    %9 = vector.extract_strided_slice %6 {offsets = [0, 0], sizes = [16, 128], strides = [1, 1]} : vector<16x384xf32> to vector<16x128xf32>
    %cst_14 = arith.constant dense<0.000000e+00> : vector<16x128xf32>
    %10 = tpu.matmul %0, %9, %cst_14 {dimension_numbers = #tpu.dot_dimension_numbers<[1], [0], [0], [1], [0, 0, 1, 1], [], []>} : vector<16x16xf32>, vector<16x128xf32>, vector<16x128xf32> -> vector<16x128xf32>
    %11 = vector.extract_strided_slice %8 {offsets = [0, 0], sizes = [24, 128], strides = [1, 1]} : vector<24x256xf32> to vector<24x128xf32>
    %cst_15 = arith.constant dense<0.000000e+00> : vector<16x128xf32>
    %12 = tpu.matmul %2, %11, %cst_15 {dimension_numbers = #tpu.dot_dimension_numbers<[1], [0], [0], [1], [0, 0, 1, 1], [], []>} : vector<16x24xf32>, vector<24x128xf32>, vector<16x128xf32> -> vector<16x128xf32>
    %13 = arith.addf %10, %12 : vector<16x128xf32>
    %14 = vector.extract_strided_slice %6 {offsets = [0, 256], sizes = [16, 128], strides = [1, 1]} : vector<16x384xf32> to vector<16x128xf32>
    %15 = arith.addf %13, %14 : vector<16x128xf32>
    %c0_16 = arith.constant 0 : index
    %c0_17 = arith.constant 0 : index
    %16 = vector.load %arg8[%c0_16, %c0_17] : memref<1x128xf32, #tpu.memory_space<vmem>>, vector<1x128xf32>
    %17 = vector.broadcast %16 : vector<1x128xf32> to vector<16x128xf32>
    %18 = arith.addf %15, %17 : vector<16x128xf32>
    %19 = vector.extract_strided_slice %6 {offsets = [0, 128], sizes = [16, 128], strides = [1, 1]} : vector<16x384xf32> to vector<16x128xf32>
    %cst_18 = arith.constant dense<0.000000e+00> : vector<24x128xf32>
    %20 = tpu.matmul %1, %19, %cst_18 {dimension_numbers = #tpu.dot_dimension_numbers<[1], [0], [0], [1], [0, 0, 1, 1], [], []>} : vector<24x16xf32>, vector<16x128xf32>, vector<24x128xf32> -> vector<24x128xf32>
    %21 = vector.extract_strided_slice %8 {offsets = [0, 128], sizes = [24, 128], strides = [1, 1]} : vector<24x256xf32> to vector<24x128xf32>
    %22 = arith.addf %20, %21 : vector<24x128xf32>
    %c0_19 = arith.constant 0 : index
    %c0_20 = arith.constant 0 : index
    %23 = vector.load %arg9[%c0_19, %c0_20] : memref<1x128xf32, #tpu.memory_space<vmem>>, vector<1x128xf32>
    %24 = vector.broadcast %23 : vector<1x128xf32> to vector<24x128xf32>
    %25 = arith.addf %22, %24 : vector<24x128xf32>
    %cst_21 = arith.constant 0.000000e+00 : f32
    %26 = vector.broadcast %cst_21 : f32 to vector<16x128xf32>
    %27 = arith.cmpf ogt, %18, %26 : vector<16x128xf32>
    %cst_22 = arith.constant 0.00999999977 : f32
    %28 = vector.broadcast %cst_22 : f32 to vector<16x128xf32>
    %29 = arith.mulf %28, %18 : vector<16x128xf32>
    %30 = arith.select %27, %18, %29 : vector<16x128xi1>, vector<16x128xf32>
    %cst_23 = arith.constant 0.000000e+00 : f32
    %31 = vector.broadcast %cst_23 : f32 to vector<24x128xf32>
    %32 = arith.cmpf ogt, %25, %31 : vector<24x128xf32>
    %cst_24 = arith.constant 0.00999999977 : f32
    %33 = vector.broadcast %cst_24 : f32 to vector<24x128xf32>
    %34 = arith.mulf %33, %25 : vector<24x128xf32>
    %35 = arith.select %32, %25, %34 : vector<24x128xi1>, vector<24x128xf32>
    %c0_25 = arith.constant 0 : index
    %c0_26 = arith.constant 0 : index
    %36 = vector.load %arg10[%c0_25, %c0_26] : memref<128x384xf32, #tpu.memory_space<vmem>>, vector<128x384xf32>
    %cst_27 = arith.constant dense<0.000000e+00> : vector<16x384xf32>
    %37 = tpu.matmul %30, %36, %cst_27 {dimension_numbers = #tpu.dot_dimension_numbers<[1], [0], [0], [1], [0, 0, 1, 1], [], []>} : vector<16x128xf32>, vector<128x384xf32>, vector<16x384xf32> -> vector<16x384xf32>
    %c0_28 = arith.constant 0 : index
    %c0_29 = arith.constant 0 : index
    %38 = vector.load %arg11[%c0_28, %c0_29] : memref<128x256xf32, #tpu.memory_space<vmem>>, vector<128x256xf32>
    %cst_30 = arith.constant dense<0.000000e+00> : vector<24x256xf32>
    %39 = tpu.matmul %35, %38, %cst_30 {dimension_numbers = #tpu.dot_dimension_numbers<[1], [0], [0], [1], [0, 0, 1, 1], [], []>} : vector<24x128xf32>, vector<128x256xf32>, vector<24x256xf32> -> vector<24x256xf32>
    %40 = vector.extract_strided_slice %37 {offsets = [0, 0], sizes = [16, 128], strides = [1, 1]} : vector<16x384xf32> to vector<16x128xf32>
    %cst_31 = arith.constant dense<0.000000e+00> : vector<16x128xf32>
    %41 = tpu.matmul %0, %40, %cst_31 {dimension_numbers = #tpu.dot_dimension_numbers<[1], [0], [0], [1], [0, 0, 1, 1], [], []>} : vector<16x16xf32>, vector<16x128xf32>, vector<16x128xf32> -> vector<16x128xf32>
    %42 = vector.extract_strided_slice %39 {offsets = [0, 0], sizes = [24, 128], strides = [1, 1]} : vector<24x256xf32> to vector<24x128xf32>
    %cst_32 = arith.constant dense<0.000000e+00> : vector<16x128xf32>
    %43 = tpu.matmul %2, %42, %cst_32 {dimension_numbers = #tpu.dot_dimension_numbers<[1], [0], [0], [1], [0, 0, 1, 1], [], []>} : vector<16x24xf32>, vector<24x128xf32>, vector<16x128xf32> -> vector<16x128xf32>
    %44 = arith.addf %41, %43 : vector<16x128xf32>
    %45 = vector.extract_strided_slice %37 {offsets = [0, 256], sizes = [16, 128], strides = [1, 1]} : vector<16x384xf32> to vector<16x128xf32>
    %46 = arith.addf %44, %45 : vector<16x128xf32>
    %c0_33 = arith.constant 0 : index
    %c0_34 = arith.constant 0 : index
    %47 = vector.load %arg12[%c0_33, %c0_34] : memref<1x128xf32, #tpu.memory_space<vmem>>, vector<1x128xf32>
    %48 = vector.broadcast %47 : vector<1x128xf32> to vector<16x128xf32>
    %49 = arith.addf %46, %48 : vector<16x128xf32>
    %50 = vector.extract_strided_slice %37 {offsets = [0, 128], sizes = [16, 128], strides = [1, 1]} : vector<16x384xf32> to vector<16x128xf32>
    %cst_35 = arith.constant dense<0.000000e+00> : vector<24x128xf32>
    %51 = tpu.matmul %1, %50, %cst_35 {dimension_numbers = #tpu.dot_dimension_numbers<[1], [0], [0], [1], [0, 0, 1, 1], [], []>} : vector<24x16xf32>, vector<16x128xf32>, vector<24x128xf32> -> vector<24x128xf32>
    %52 = vector.extract_strided_slice %39 {offsets = [0, 128], sizes = [24, 128], strides = [1, 1]} : vector<24x256xf32> to vector<24x128xf32>
    %53 = arith.addf %51, %52 : vector<24x128xf32>
    %c0_36 = arith.constant 0 : index
    %c0_37 = arith.constant 0 : index
    %54 = vector.load %arg13[%c0_36, %c0_37] : memref<1x128xf32, #tpu.memory_space<vmem>>, vector<1x128xf32>
    %55 = vector.broadcast %54 : vector<1x128xf32> to vector<24x128xf32>
    %56 = arith.addf %53, %55 : vector<24x128xf32>
    %cst_38 = arith.constant 0.000000e+00 : f32
    %57 = vector.broadcast %cst_38 : f32 to vector<16x128xf32>
    %58 = arith.cmpf ogt, %49, %57 : vector<16x128xf32>
    %cst_39 = arith.constant 0.00999999977 : f32
    %59 = vector.broadcast %cst_39 : f32 to vector<16x128xf32>
    %60 = arith.mulf %59, %49 : vector<16x128xf32>
    %61 = arith.select %58, %49, %60 : vector<16x128xi1>, vector<16x128xf32>
    %cst_40 = arith.constant 0.000000e+00 : f32
    %62 = vector.broadcast %cst_40 : f32 to vector<24x128xf32>
    %63 = arith.cmpf ogt, %56, %62 : vector<24x128xf32>
    %cst_41 = arith.constant 0.00999999977 : f32
    %64 = vector.broadcast %cst_41 : f32 to vector<24x128xf32>
    %65 = arith.mulf %64, %56 : vector<24x128xf32>
    %66 = arith.select %63, %56, %65 : vector<24x128xi1>, vector<24x128xf32>
    %c0_42 = arith.constant 0 : index
    %c0_43 = arith.constant 0 : index
    %67 = vector.load %arg14[%c0_42, %c0_43] : memref<1x128xf32, #tpu.memory_space<vmem>>, vector<1x128xf32>
    %c0_44 = arith.constant 0 : index
    %c0_45 = arith.constant 0 : index
    %68 = vector.load %arg15[%c0_44, %c0_45] : memref<1x128xf32, #tpu.memory_space<vmem>>, vector<1x128xf32>
    %69 = tpu.iota {dimensions = array<i32: 0>} : vector<16x128xi32>
    %c16_i32 = arith.constant 16 : i32
    %70 = vector.broadcast %c16_i32 : i32 to vector<16x128xi32>
    %71 = arith.cmpi slt, %69, %70 : vector<16x128xi32>
    %cst_46 = arith.constant 0.000000e+00 : f32
    %72 = vector.broadcast %cst_46 : f32 to vector<16x128xf32>
    %73 = arith.select %71, %61, %72 : vector<16x128xi1>, vector<16x128xf32>
    %cst_47 = arith.constant dense<0.000000e+00> : vector<128xf32>
    %74 = vector.multi_reduction <add>, %73, %cst_47 [0] : vector<16x128xf32> to vector<128xf32>
    %75 = vector.shape_cast %74 : vector<128xf32> to vector<1x128xf32>
    %cst_48 = arith.constant 6.250000e-02 : f32
    %76 = vector.broadcast %cst_48 : f32 to vector<1x128xf32>
    %77 = arith.mulf %75, %76 : vector<1x128xf32>
    %78 = arith.mulf %73, %73 : vector<16x128xf32>
    %cst_49 = arith.constant dense<0.000000e+00> : vector<128xf32>
    %79 = vector.multi_reduction <add>, %78, %cst_49 [0] : vector<16x128xf32> to vector<128xf32>
    %80 = vector.shape_cast %79 : vector<128xf32> to vector<1x128xf32>
    %cst_50 = arith.constant 6.250000e-02 : f32
    %81 = vector.broadcast %cst_50 : f32 to vector<1x128xf32>
    %82 = arith.mulf %80, %81 : vector<1x128xf32>
    %83 = arith.mulf %77, %77 : vector<1x128xf32>
    %84 = arith.subf %82, %83 : vector<1x128xf32>
    %cst_51 = arith.constant 0.000000e+00 : f32
    %85 = vector.broadcast %cst_51 : f32 to vector<1x128xf32>
    %86 = arith.maximumf %84, %85 : vector<1x128xf32>
    %cst_52 = arith.constant 9.99999974E-6 : f32
    %87 = vector.broadcast %cst_52 : f32 to vector<1x128xf32>
    %88 = arith.addf %86, %87 : vector<1x128xf32>
    %89 = math.rsqrt %88 : vector<1x128xf32>
    %90 = vector.broadcast %77 : vector<1x128xf32> to vector<16x128xf32>
    %91 = arith.subf %61, %90 : vector<16x128xf32>
    %92 = arith.mulf %89, %67 : vector<1x128xf32>
    %93 = vector.broadcast %92 : vector<1x128xf32> to vector<16x128xf32>
    %94 = arith.mulf %91, %93 : vector<16x128xf32>
    %95 = vector.broadcast %68 : vector<1x128xf32> to vector<16x128xf32>
    %96 = arith.addf %94, %95 : vector<16x128xf32>
    %c0_53 = arith.constant 0 : index
    %c0_54 = arith.constant 0 : index
    %97 = vector.load %arg16[%c0_53, %c0_54] : memref<16x128xf32, #tpu.memory_space<vmem>>, vector<16x128xf32>
    tpu.vector_store %arg16[%c0_53, %c0_54], %96 {strides = array<i32>} : memref<16x128xf32, #tpu.memory_space<vmem>>, vector<16x128xf32>,
    %98 = tpu.iota {dimensions = array<i32: 0>} : vector<24x128xi32>
    %c24_i32 = arith.constant 24 : i32
    %99 = vector.broadcast %c24_i32 : i32 to vector<24x128xi32>
    %100 = arith.cmpi slt, %98, %99 : vector<24x128xi32>
    %cst_55 = arith.constant 0.000000e+00 : f32
    %101 = vector.broadcast %cst_55 : f32 to vector<24x128xf32>
    %102 = arith.select %100, %66, %101 : vector<24x128xi1>, vector<24x128xf32>
    %cst_56 = arith.constant dense<0.000000e+00> : vector<128xf32>
    %103 = vector.multi_reduction <add>, %102, %cst_56 [0] : vector<24x128xf32> to vector<128xf32>
    %104 = vector.shape_cast %103 : vector<128xf32> to vector<1x128xf32>
    %cst_57 = arith.constant 0.0416666679 : f32
    %105 = vector.broadcast %cst_57 : f32 to vector<1x128xf32>
    %106 = arith.mulf %104, %105 : vector<1x128xf32>
    %107 = arith.mulf %102, %102 : vector<24x128xf32>
    %cst_58 = arith.constant dense<0.000000e+00> : vector<128xf32>
    %108 = vector.multi_reduction <add>, %107, %cst_58 [0] : vector<24x128xf32> to vector<128xf32>
    %109 = vector.shape_cast %108 : vector<128xf32> to vector<1x128xf32>
    %cst_59 = arith.constant 0.0416666679 : f32
    %110 = vector.broadcast %cst_59 : f32 to vector<1x128xf32>
    %111 = arith.mulf %109, %110 : vector<1x128xf32>
    %112 = arith.mulf %106, %106 : vector<1x128xf32>
    %113 = arith.subf %111, %112 : vector<1x128xf32>
    %cst_60 = arith.constant 0.000000e+00 : f32
    %114 = vector.broadcast %cst_60 : f32 to vector<1x128xf32>
    %115 = arith.maximumf %113, %114 : vector<1x128xf32>
    %cst_61 = arith.constant 9.99999974E-6 : f32
    %116 = vector.broadcast %cst_61 : f32 to vector<1x128xf32>
    %117 = arith.addf %115, %116 : vector<1x128xf32>
    %118 = math.rsqrt %117 : vector<1x128xf32>
    %119 = vector.broadcast %106 : vector<1x128xf32> to vector<24x128xf32>
    %120 = arith.subf %66, %119 : vector<24x128xf32>
    %121 = arith.mulf %118, %67 : vector<1x128xf32>
    %122 = vector.broadcast %121 : vector<1x128xf32> to vector<24x128xf32>
    %123 = arith.mulf %120, %122 : vector<24x128xf32>
    %124 = vector.broadcast %68 : vector<1x128xf32> to vector<24x128xf32>
    %125 = arith.addf %123, %124 : vector<24x128xf32>
    %c0_62 = arith.constant 0 : index
    %c0_63 = arith.constant 0 : index
    %126 = vector.load %arg17[%c0_62, %c0_63] : memref<24x128xf32, #tpu.memory_space<vmem>>, vector<24x128xf32>
    tpu.vector_store %arg17[%c0_62, %c0_63], %125 {strides = array<i32>} : memref<24x128xf32, #tpu.memory_space<vmem>>, vector<24x128xf32>,
    return
  }
  func.func @transform_0(%arg0: i32) -> (i32, i32) {
    %c0_i32 = arith.constant 0 : i32
    %c0_i32_0 = arith.constant 0 : i32
    %c0_i32_1 = arith.constant 0 : i32
    return %c0_i32, %c0_i32_0 : i32, i32
  }
  func.func @transform_1(%arg0: i32) -> (i32, i32) {
    %c0_i32 = arith.constant 0 : i32
    %c0_i32_0 = arith.constant 0 : i32
    %c0_i32_1 = arith.constant 0 : i32
    return %c0_i32, %c0_i32_0 : i32, i32
  }
  func.func @transform_2(%arg0: i32) -> (i32, i32) {
    %c0_i32 = arith.constant 0 : i32
    %c0_i32_0 = arith.constant 0 : i32
    %c0_i32_1 = arith.constant 0 : i32
    return %c0_i32, %c0_i32_0 : i32, i32
  }
  func.func @transform_3(%arg0: i32) -> (i32, i32) {
    %c0_i32 = arith.constant 0 : i32
    %c0_i32_0 = arith.constant 0 : i32
    %c0_i32_1 = arith.constant 0 : i32
    return %c0_i32, %c0_i32_0 : i32, i32
  }
  func.func @transform_4(%arg0: i32) -> (i32, i32) {
    %c0_i32 = arith.constant 0 : i32
    %c0_i32_0 = arith.constant 0 : i32
    %c0_i32_1 = arith.constant 0 : i32
    return %c0_i32, %c0_i32_0 : i32, i32
  }
  func.func @transform_5(%arg0: i32) -> (i32, i32) {
    %c0_i32 = arith.constant 0 : i32
    %c0_i32_0 = arith.constant 0 : i32
    %c0_i32_1 = arith.constant 0 : i32
    return %c0_i32, %c0_i32_0 : i32, i32
  }
  func.func @transform_6(%arg0: i32) -> (i32, i32) {
    %c0_i32 = arith.constant 0 : i32
    %c0_i32_0 = arith.constant 0 : i32
    %c0_i32_1 = arith.constant 0 : i32
    return %c0_i32, %c0_i32_0 : i32, i32
  }
  func.func @transform_7(%arg0: i32) -> (i32, i32) {
    %c0_i32 = arith.constant 0 : i32
    %c0_i32_0 = arith.constant 0 : i32
    %c0_i32_1 = arith.constant 0 : i32
    return %c0_i32, %c0_i32_0 : i32, i32
  }
  func.func @transform_8(%arg0: i32) -> (i32, i32) {
    %c0_i32 = arith.constant 0 : i32
    %c0_i32_0 = arith.constant 0 : i32
    %c0_i32_1 = arith.constant 0 : i32
    return %c0_i32, %c0_i32_0 : i32, i32
  }
  func.func @transform_9(%arg0: i32) -> (i32, i32) {
    %c0_i32 = arith.constant 0 : i32
    %c0_i32_0 = arith.constant 0 : i32
    %c0_i32_1 = arith.constant 0 : i32
    return %c0_i32, %c0_i32_0 : i32, i32
  }
  func.func @transform_10(%arg0: i32) -> (i32, i32) {
    %c0_i32 = arith.constant 0 : i32
    %c0_i32_0 = arith.constant 0 : i32
    %c0_i32_1 = arith.constant 0 : i32
    return %c0_i32, %c0_i32_0 : i32, i32
  }
  func.func @transform_11(%arg0: i32) -> (i32, i32) {
    %c0_i32 = arith.constant 0 : i32
    %c0_i32_0 = arith.constant 0 : i32
    %c0_i32_1 = arith.constant 0 : i32
    return %c0_i32, %c0_i32_0 : i32, i32
  }
  func.func @transform_12(%arg0: i32) -> (i32, i32) {
    %c0_i32 = arith.constant 0 : i32
    %c0_i32_0 = arith.constant 0 : i32
    %c0_i32_1 = arith.constant 0 : i32
    return %c0_i32, %c0_i32_0 : i32, i32
  }
  func.func @transform_13(%arg0: i32) -> (i32, i32) {
    %c0_i32 = arith.constant 0 : i32
    %c0_i32_0 = arith.constant 0 : i32
    %c0_i32_1 = arith.constant 0 : i32
    return %c0_i32, %c0_i32_0 : i32, i32
  }
  func.func @transform_14(%arg0: i32) -> (i32, i32) {
    %c0_i32 = arith.constant 0 : i32
    %c0_i32_0 = arith.constant 0 : i32
    %c0_i32_1 = arith.constant 0 : i32
    return %c0_i32, %c0_i32_0 : i32, i32
  }
  func.func @transform_15(%arg0: i32) -> (i32, i32) {
    %c0_i32 = arith.constant 0 : i32
    %c0_i32_0 = arith.constant 0 : i32
    %c0_i32_1 = arith.constant 0 : i32
    return %c0_i32, %c0_i32_0 : i32, i32
  }
  func.func @transform_16(%arg0: i32) -> (i32, i32) {
    %c0_i32 = arith.constant 0 : i32
    %c0_i32_0 = arith.constant 0 : i32
    %c0_i32_1 = arith.constant 0 : i32
    return %c0_i32, %c0_i32_0 : i32, i32
  }
}

</mosaic_0001>

<llo_original>
// kernel: hetero_gnn_forward.1
$region0: #{hetero_gnn_forward.1}
  #allocation0 [shape = 'u32[]', space=smem, size = 0x4, offset = 0x4, fixed_abs, tag = 'smem constant byte address 0x4 - core index']
  #allocation1 [shape = 'u32[72,128]{1,0:T(1,128)}', space=vmem, size = 0x9000, scoped, tag = 'internal scratch']
  %s0 = inlined_call_operand.vmem [shape: f32[16,16], index: 0, kind: input, shape index: {}]
  %s1 = inlined_call_operand.vmem [shape: f32[24,16], index: 1, kind: input, shape index: {}]
  %s2 = inlined_call_operand.vmem [shape: f32[16,24], index: 2, kind: input, shape index: {}]
  %s3 = inlined_call_operand.vmem [shape: f32[16,128], index: 3, kind: input, shape index: {}]
  %s4 = inlined_call_operand.vmem [shape: f32[24,128], index: 4, kind: input, shape index: {}]
  %s5 = inlined_call_operand.vmem [shape: f32[128,384], index: 5, kind: input, shape index: {}]
  %s6 = inlined_call_operand.vmem [shape: f32[128,256], index: 6, kind: input, shape index: {}]
  %s7 = inlined_call_operand.vmem [shape: f32[1,128], index: 7, kind: input, shape index: {}]
  %s8 = inlined_call_operand.vmem [shape: f32[1,128], index: 8, kind: input, shape index: {}]
  %s9 = inlined_call_operand.vmem [shape: f32[128,384], index: 9, kind: input, shape index: {}]
  %s10 = inlined_call_operand.vmem [shape: f32[128,256], index: 10, kind: input, shape index: {}]
  %s11 = inlined_call_operand.vmem [shape: f32[1,128], index: 11, kind: input, shape index: {}]
  %s12 = inlined_call_operand.vmem [shape: f32[1,128], index: 12, kind: input, shape index: {}]
  %s13 = inlined_call_operand.vmem [shape: f32[1,128], index: 13, kind: input, shape index: {}]
  %s14 = inlined_call_operand.vmem [shape: f32[1,128], index: 14, kind: input, shape index: {}]
  %s15 = inlined_call_operand.hbm [shape: f32[16,128], index: 15, kind: output, shape index: {0}]
  %s16 = inlined_call_operand.hbm [shape: f32[24,128], index: 16, kind: output, shape index: {1}]
  %17 = xla_tuple %s15, %s16
  %s18 = sld [smem:[#allocation0]]
  $region78: #{hetero_gnn_forward.1} parent=0
    _
  %s20 = ssub.s32 1, %s18
  %s21 = scalar_select 0, %s20, %s18
  $region1: #{hetero_gnn_forward.1} parent=0
    #allocation2 [shape = 'u8[8192]{0}', space=vmem, size = 0x2000, scoped, tag = 'output window, operand 0, single buffered']
    #allocation3 [shape = 's32[1]{0}', space=sflag, size = 0x4, scoped, tag = 'scoped memory for hetero_gnn_forward.1']
    #allocation4 [shape = 'u8[12288]{0}', space=vmem, size = 0x3000, scoped, tag = 'output window, operand 1, single buffered']
    #allocation5 [shape = 's32[1]{0}', space=sflag, size = 0x4, scoped, tag = 'scoped memory for hetero_gnn_forward.1']
    %22 = vsyncpa [#allocation3], 0
    %23 = vsyncpa [#allocation5], 0
    // Predicated region
    $region2: #{hetero_gnn_forward.1} parent=1 // pred_check
      _
    $region3: #{hetero_gnn_forward.1} parent=1 // pred_check_branch
      %25 = sbr.rel (0) target = $region5
    $region4: #{hetero_gnn_forward.1} parent=1 // pred_region
      _
    $region5: #{hetero_gnn_forward.1} parent=1 // pred_fallthru
      _
    // Predicated region
    $region6: #{hetero_gnn_forward.1} parent=1 // pred_check
      _
    $region7: #{hetero_gnn_forward.1} parent=1 // pred_check_branch
      %27 = sbr.rel (0) target = $region9
    $region8: #{hetero_gnn_forward.1} parent=1 // pred_region
      _
    $region9: #{hetero_gnn_forward.1} parent=1 // pred_fallthru
      _
    // Predicated region
    $region10: #{hetero_gnn_forward.1} parent=1 // pred_check
      _
    $region11: #{hetero_gnn_forward.1} parent=1 // pred_check_branch
      %29 = sbr.rel (0) target = $region13
    $region12: #{hetero_gnn_forward.1} parent=1 // pred_region
      _
    $region13: #{hetero_gnn_forward.1} parent=1 // pred_fallthru
      _
    // Predicated region
    $region14: #{hetero_gnn_forward.1} parent=1 // pred_check
      _
    $region15: #{hetero_gnn_forward.1} parent=1 // pred_check_branch
      %31 = sbr.rel (0) target = $region17
    $region16: #{hetero_gnn_forward.1} parent=1 // pred_region
      _
    $region17: #{hetero_gnn_forward.1} parent=1 // pred_fallthru
      _
    // Predicated region
    $region18: #{hetero_gnn_forward.1} parent=1 // pred_check
      _
    $region19: #{hetero_gnn_forward.1} parent=1 // pred_check_branch
      %33 = sbr.rel (0) target = $region21
    $region20: #{hetero_gnn_forward.1} parent=1 // pred_region
      _
    $region21: #{hetero_gnn_forward.1} parent=1 // pred_fallthru
      _
    // Predicated region
    $region22: #{hetero_gnn_forward.1} parent=1 // pred_check
      _
    $region23: #{hetero_gnn_forward.1} parent=1 // pred_check_branch
      %35 = sbr.rel (0) target = $region25
    $region24: #{hetero_gnn_forward.1} parent=1 // pred_region
      _
    $region25: #{hetero_gnn_forward.1} parent=1 // pred_fallthru
      _
    // Predicated region
    $region26: #{hetero_gnn_forward.1} parent=1 // pred_check
      _
    $region27: #{hetero_gnn_forward.1} parent=1 // pred_check_branch
      %37 = sbr.rel (0) target = $region29
    $region28: #{hetero_gnn_forward.1} parent=1 // pred_region
      _
    $region29: #{hetero_gnn_forward.1} parent=1 // pred_fallthru
      _
    // Predicated region
    $region30: #{hetero_gnn_forward.1} parent=1 // pred_check
      _
    $region31: #{hetero_gnn_forward.1} parent=1 // pred_check_branch
      %39 = sbr.rel (0) target = $region33
    $region32: #{hetero_gnn_forward.1} parent=1 // pred_region
      _
    $region33: #{hetero_gnn_forward.1} parent=1 // pred_fallthru
      _
    // Predicated region
    $region34: #{hetero_gnn_forward.1} parent=1 // pred_check
      _
    $region35: #{hetero_gnn_forward.1} parent=1 // pred_check_branch
      %41 = sbr.rel (0) target = $region37
    $region36: #{hetero_gnn_forward.1} parent=1 // pred_region
      _
    $region37: #{hetero_gnn_forward.1} parent=1 // pred_fallthru
      _
    // Predicated region
    $region38: #{hetero_gnn_forward.1} parent=1 // pred_check
      _
    $region39: #{hetero_gnn_forward.1} parent=1 // pred_check_branch
      %43 = sbr.rel (0) target = $region41
    $region40: #{hetero_gnn_forward.1} parent=1 // pred_region
      _
    $region41: #{hetero_gnn_forward.1} parent=1 // pred_fallthru
      _
    // Predicated region
    $region42: #{hetero_gnn_forward.1} parent=1 // pred_check
      _
    $region43: #{hetero_gnn_forward.1} parent=1 // pred_check_branch
      %45 = sbr.rel (0) target = $region45
    $region44: #{hetero_gnn_forward.1} parent=1 // pred_region
      _
    $region45: #{hetero_gnn_forward.1} parent=1 // pred_fallthru
      _
    // Predicated region
    $region46: #{hetero_gnn_forward.1} parent=1 // pred_check
      _
    $region47: #{hetero_gnn_forward.1} parent=1 // pred_check_branch
      %47 = sbr.rel (0) target = $region49
    $region48: #{hetero_gnn_forward.1} parent=1 // pred_region
      _
    $region49: #{hetero_gnn_forward.1} parent=1 // pred_fallthru
      _
    // Predicated region
    $region50: #{hetero_gnn_forward.1} parent=1 // pred_check
      _
    $region51: #{hetero_gnn_forward.1} parent=1 // pred_check_branch
      %49 = sbr.rel (0) target = $region53
    $region52: #{hetero_gnn_forward.1} parent=1 // pred_region
      _
    $region53: #{hetero_gnn_forward.1} parent=1 // pred_fallthru
      _
    // Predicated region
    $region54: #{hetero_gnn_forward.1} parent=1 // pred_check
      _
    $region55: #{hetero_gnn_forward.1} parent=1 // pred_check_branch
      %51 = sbr.rel (0) target = $region57
    $region56: #{hetero_gnn_forward.1} parent=1 // pred_region
      _
    $region57: #{hetero_gnn_forward.1} parent=1 // pred_fallthru
      _
    // Predicated region
    $region58: #{hetero_gnn_forward.1} parent=1 // pred_check
      _
    $region59: #{hetero_gnn_forward.1} parent=1 // pred_check_branch
      %53 = sbr.rel (0) target = $region61
    $region60: #{hetero_gnn_forward.1} parent=1 // pred_region
      _
    $region61: #{hetero_gnn_forward.1} parent=1 // pred_fallthru
      _
    %v54 = vld [vmem:[%s0] sm:$0xff]
    %v55 = vld [vmem:[%s0 + $0x8] sm:$0xff]
    %v56 = vld [vmem:[%s1] sm:$0xff]
    %v57 = vld [vmem:[%s1 + $0x8] sm:$0xff]
    %v58 = vld [vmem:[%s1 + $0x10] sm:$0xff]
    %v59 = vld [vmem:[%s2] sm:$0xff]
    %v60 = vld [vmem:[%s2 + $0x8] sm:$0xff]
    %v61 = vld [vmem:[%s3] sm:$0xff]
    %v62 = vld [vmem:[%s3 + $0x8] sm:$0xff]
    %v63 = vld [vmem:[%s4] sm:$0xff]
    %v64 = vld [vmem:[%s4 + $0x8] sm:$0xff]
    %v65 = vld [vmem:[%s4 + $0x10] sm:$0xff]
    %v66 = vld [vmem:[%s5] sm:$0xff]
    %v67 = vld [vmem:[%s5 + $0x8] sm:$0xff]
    %v68 = vld [vmem:[%s5 + $0x10] sm:$0xff]
    %v69 = vld [vmem:[%s5 + $0x18] sm:$0xff]
    %v70 = vld [vmem:[%s5 + $0x20] sm:$0xff]
    %v71 = vld [vmem:[%s5 + $0x28] sm:$0xff]
    %v72 = vld [vmem:[%s5 + $0x30] sm:$0xff]
    %v73 = vld [vmem:[%s5 + $0x38] sm:$0xff]
    %v74 = vld [vmem:[%s5 + $0x40] sm:$0xff]
    %v75 = vld [vmem:[%s5 + $0x48] sm:$0xff]
    %v76 = vld [vmem:[%s5 + $0x50] sm:$0xff]
    %v77 = vld [vmem:[%s5 + $0x58] sm:$0xff]
    %v78 = vld [vmem:[%s5 + $0x60] sm:$0xff]
    %v79 = vld [vmem:[%s5 + $0x68] sm:$0xff]
    %v80 = vld [vmem:[%s5 + $0x70] sm:$0xff]
    %v81 = vld [vmem:[%s5 + $0x78] sm:$0xff]
    %v82 = vld [vmem:[%s5 + $0x80] sm:$0xff]
    %v83 = vld [vmem:[%s5 + $0x88] sm:$0xff]
    %v84 = vld [vmem:[%s5 + $0x90] sm:$0xff]
    %v85 = vld [vmem:[%s5 + $0x98] sm:$0xff]
    %v86 = vld [vmem:[%s5 + $0xa0] sm:$0xff]
    %v87 = vld [vmem:[%s5 + $0xa8] sm:$0xff]
    %v88 = vld [vmem:[%s5 + $0xb0] sm:$0xff]
    %v89 = vld [vmem:[%s5 + $0xb8] sm:$0xff]
    %v90 = vld [vmem:[%s5 + $0xc0] sm:$0xff]
    %v91 = vld [vmem:[%s5 + $0xc8] sm:$0xff]
    %v92 = vld [vmem:[%s5 + $0xd0] sm:$0xff]
    %v93 = vld [vmem:[%s5 + $0xd8] sm:$0xff]
    %v94 = vld [vmem:[%s5 + $0xe0] sm:$0xff]
    %v95 = vld [vmem:[%s5 + $0xe8] sm:$0xff]
    %v96 = vld [vmem:[%s5 + $0xf0] sm:$0xff]
    %v97 = vld [vmem:[%s5 + $0xf8] sm:$0xff]
    %v98 = vld [vmem:[%s5 + $0x100] sm:$0xff]
    %v99 = vld [vmem:[%s5 + $0x108] sm:$0xff]
    %v100 = vld [vmem:[%s5 + $0x110] sm:$0xff]
    %v101 = vld [vmem:[%s5 + $0x118] sm:$0xff]
    %v102 = vld [vmem:[%s5 + $0x120] sm:$0xff]
    %v103 = vld [vmem:[%s5 + $0x128] sm:$0xff]
    %v104 = vld [vmem:[%s5 + $0x130] sm:$0xff]
    %v105 = vld [vmem:[%s5 + $0x138] sm:$0xff]
    %v106 = vld [vmem:[%s5 + $0x140] sm:$0xff]
    %v107 = vld [vmem:[%s5 + $0x148] sm:$0xff]
    %v108 = vld [vmem:[%s5 + $0x150] sm:$0xff]
    %v109 = vld [vmem:[%s5 + $0x158] sm:$0xff]
    %v110 = vld [vmem:[%s5 + $0x160] sm:$0xff]
    %v111 = vld [vmem:[%s5 + $0x168] sm:$0xff]
    %v112 = vld [vmem:[%s5 + $0x170] sm:$0xff]
    %v113 = vld [vmem:[%s5 + $0x178] sm:$0xff]
    %114 = vmatpush.msra.mxu0 %v111
    %115 = vmatpush.msra.mxu0 %v108
    %116 = vmatpush.msra.mxu0 %v105
    %117 = vmatpush.msra.mxu0 %v102
    %118 = vmatpush.msra.mxu0 %v99
    %119 = vmatpush.msra.mxu0 %v96
    %120 = vmatpush.msra.mxu0 %v93
    %121 = vmatpush.msra.mxu0 %v90
    %122 = vmatpush.msra.mxu0 %v87
    %123 = vmatpush.msra.mxu0 %v84
    %124 = vmatpush.msra.mxu0 %v81
    %125 = vmatpush.msra.mxu0 %v78
    %126 = vmatpush.msra.mxu0 %v75
    %127 = vmatpush.msra.mxu0 %v72
    %128 = vmatpush.msra.mxu0 %v69
    %129 = vmatpush.msra.mxu0 %v66
    %130 = vmatmul.f32.gmra.mxu0 %v61
    %v131 = vpop.f32.mrf.mxu0
    %v132 = vadd.f32 0.0, %v131
    %133 = vmatmul.f32.gmra.mxu0 %v62
    %v134 = vpop.f32.mrf.mxu0
    %v135 = vadd.f32 0.0, %v134
    %136 = vdwg.mxu0
    %137 = vmatpush.msra.mxu0 %v112
    %138 = vmatpush.msra.mxu0 %v109
    %139 = vmatpush.msra.mxu0 %v106
    %140 = vmatpush.msra.mxu0 %v103
    %141 = vmatpush.msra.mxu0 %v100
    %142 = vmatpush.msra.mxu0 %v97
    %143 = vmatpush.msra.mxu0 %v94
    %144 = vmatpush.msra.mxu0 %v91
    %145 = vmatpush.msra.mxu0 %v88
    %146 = vmatpush.msra.mxu0 %v85
    %147 = vmatpush.msra.mxu0 %v82
    %148 = vmatpush.msra.mxu0 %v79
    %149 = vmatpush.msra.mxu0 %v76
    %150 = vmatpush.msra.mxu0 %v73
    %151 = vmatpush.msra.mxu0 %v70
    %152 = vmatpush.msra.mxu0 %v67
    %153 = vmatmul.f32.gmra.mxu0 %v61
    %v154 = vpop.f32.mrf.mxu0
    %v155 = vadd.f32 0.0, %v154
    %156 = vmatmul.f32.gmra.mxu0 %v62
    %v157 = vpop.f32.mrf.mxu0
    %v158 = vadd.f32 0.0, %v157
    %159 = vdwg.mxu0
    %160 = vmatpush.msra.mxu0 %v113
    %161 = vmatpush.msra.mxu0 %v110
    %162 = vmatpush.msra.mxu0 %v107
    %163 = vmatpush.msra.mxu0 %v104
    %164 = vmatpush.msra.mxu0 %v101
    %165 = vmatpush.msra.mxu0 %v98
    %166 = vmatpush.msra.mxu0 %v95
    %167 = vmatpush.msra.mxu0 %v92
    %168 = vmatpush.msra.mxu0 %v89
    %169 = vmatpush.msra.mxu0 %v86
    %170 = vmatpush.msra.mxu0 %v83
    %171 = vmatpush.msra.mxu0 %v80
    %172 = vmatpush.msra.mxu0 %v77
    %173 = vmatpush.msra.mxu0 %v74
    %174 = vmatpush.msra.mxu0 %v71
    %175 = vmatpush.msra.mxu0 %v68
    %176 = vmatmul.f32.gmra.mxu0 %v61
    %v177 = vpop.f32.mrf.mxu0
    %v178 = vadd.f32 0.0, %v177
    %179 = vmatmul.f32.gmra.mxu0 %v62
    %v180 = vpop.f32.mrf.mxu0
    %v181 = vadd.f32 0.0, %v180
    %182 = vdwg.mxu0
    %v183 = vld [vmem:[%s6] sm:$0xff]
    %v184 = vld [vmem:[%s6 + $0x8] sm:$0xff]
    %v185 = vld [vmem:[%s6 + $0x10] sm:$0xff]
    %v186 = vld [vmem:[%s6 + $0x18] sm:$0xff]
    %v187 = vld [vmem:[%s6 + $0x20] sm:$0xff]
    %v188 = vld [vmem:[%s6 + $0x28] sm:$0xff]
    %v189 = vld [vmem:[%s6 + $0x30] sm:$0xff]
    %v190 = vld [vmem:[%s6 + $0x38] sm:$0xff]
    %v191 = vld [vmem:[%s6 + $0x40] sm:$0xff]
    %v192 = vld [vmem:[%s6 + $0x48] sm:$0xff]
    %v193 = vld [vmem:[%s6 + $0x50] sm:$0xff]
    %v194 = vld [vmem:[%s6 + $0x58] sm:$0xff]
    %v195 = vld [vmem:[%s6 + $0x60] sm:$0xff]
    %v196 = vld [vmem:[%s6 + $0x68] sm:$0xff]
    %v197 = vld [vmem:[%s6 + $0x70] sm:$0xff]
    %v198 = vld [vmem:[%s6 + $0x78] sm:$0xff]
    %v199 = vld [vmem:[%s6 + $0x80] sm:$0xff]
    %v200 = vld [vmem:[%s6 + $0x88] sm:$0xff]
    %v201 = vld [vmem:[%s6 + $0x90] sm:$0xff]
    %v202 = vld [vmem:[%s6 + $0x98] sm:$0xff]
    %v203 = vld [vmem:[%s6 + $0xa0] sm:$0xff]
    %v204 = vld [vmem:[%s6 + $0xa8] sm:$0xff]
    %v205 = vld [vmem:[%s6 + $0xb0] sm:$0xff]
    %v206 = vld [vmem:[%s6 + $0xb8] sm:$0xff]
    %v207 = vld [vmem:[%s6 + $0xc0] sm:$0xff]
    %v208 = vld [vmem:[%s6 + $0xc8] sm:$0xff]
    %v209 = vld [vmem:[%s6 + $0xd0] sm:$0xff]
    %v210 = vld [vmem:[%s6 + $0xd8] sm:$0xff]
    %v211 = vld [vmem:[%s6 + $0xe0] sm:$0xff]
    %v212 = vld [vmem:[%s6 + $0xe8] sm:$0xff]
    %v213 = vld [vmem:[%s6 + $0xf0] sm:$0xff]
    %v214 = vld [vmem:[%s6 + $0xf8] sm:$0xff]
    %215 = vmatpush.msra.mxu0 %v213
    %216 = vmatpush.msra.mxu0 %v211
    %217 = vmatpush.msra.mxu0 %v209
    %218 = vmatpush.msra.mxu0 %v207
    %219 = vmatpush.msra.mxu0 %v205
    %220 = vmatpush.msra.mxu0 %v203
    %221 = vmatpush.msra.mxu0 %v201
    %222 = vmatpush.msra.mxu0 %v199
    %223 = vmatpush.msra.mxu0 %v197
    %224 = vmatpush.msra.mxu0 %v195
    %225 = vmatpush.msra.mxu0 %v193
    %226 = vmatpush.msra.mxu0 %v191
    %227 = vmatpush.msra.mxu0 %v189
    %228 = vmatpush.msra.mxu0 %v187
    %229 = vmatpush.msra.mxu0 %v185
    %230 = vmatpush.msra.mxu0 %v183
    %231 = vmatmul.f32.gmra.mxu0 %v63
    %v232 = vpop.f32.mrf.mxu0
    %v233 = vadd.f32 0.0, %v232
    %234 = vmatmul.f32.gmra.mxu0 %v64
    %v235 = vpop.f32.mrf.mxu0
    %v236 = vadd.f32 0.0, %v235
    %237 = vmatmul.f32.gmra.mxu0 %v65
    %v238 = vpop.f32.mrf.mxu0
    %v239 = vadd.f32 0.0, %v238
    %240 = vdwg.mxu0
    %241 = vmatpush.msra.mxu0 %v214
    %242 = vmatpush.msra.mxu0 %v212
    %243 = vmatpush.msra.mxu0 %v210
    %244 = vmatpush.msra.mxu0 %v208
    %245 = vmatpush.msra.mxu0 %v206
    %246 = vmatpush.msra.mxu0 %v204
    %247 = vmatpush.msra.mxu0 %v202
    %248 = vmatpush.msra.mxu0 %v200
    %249 = vmatpush.msra.mxu0 %v198
    %250 = vmatpush.msra.mxu0 %v196
    %251 = vmatpush.msra.mxu0 %v194
    %252 = vmatpush.msra.mxu0 %v192
    %253 = vmatpush.msra.mxu0 %v190
    %254 = vmatpush.msra.mxu0 %v188
    %255 = vmatpush.msra.mxu0 %v186
    %256 = vmatpush.msra.mxu0 %v184
    %257 = vmatmul.f32.gmra.mxu0 %v63
    %v258 = vpop.f32.mrf.mxu0
    %v259 = vadd.f32 0.0, %v258
    %260 = vmatmul.f32.gmra.mxu0 %v64
    %v261 = vpop.f32.mrf.mxu0
    %v262 = vadd.f32 0.0, %v261
    %263 = vmatmul.f32.gmra.mxu0 %v65
    %v264 = vpop.f32.mrf.mxu0
    %v265 = vadd.f32 0.0, %v264
    %266 = vdwg.mxu0
    %vm267 = vcmask 195584
    %v269 = vsel %vm267, %v59, 0
    %v272 = vsel %vm267, %v60, 0
    %274 = vmatpush.msra.mxu0 0.0
    %275 = vmatpush.msra.mxu0 0.0
    %276 = vmatpush.msra.mxu0 0.0
    %277 = vmatpush.msra.mxu0 0.0
    %278 = vmatpush.msra.mxu0 0.0
    %279 = vmatpush.msra.mxu0 0.0
    %280 = vmatpush.msra.mxu0 0.0
    %281 = vmatpush.msra.mxu0 0.0
    %282 = vmatpush.msra.mxu0 0.0
    %283 = vmatpush.msra.mxu0 0.0
    %284 = vmatpush.msra.mxu0 0.0
    %285 = vmatpush.msra.mxu0 0.0
    %286 = vmatpush.msra.mxu0 0.0
    %287 = vmatpush.msra.mxu0 %v239
    %288 = vmatpush.msra.mxu0 %v236
    %289 = vmatpush.msra.mxu0 %v233
    %290 = vmatmul.f32.gmra.mxu0 %v269
    %v291 = vpop.f32.mrf.mxu0
    %v292 = vadd.f32 0.0, %v291
    %293 = vmatmul.f32.gmra.mxu0 %v272
    %v294 = vpop.f32.mrf.mxu0
    %v295 = vadd.f32 0.0, %v294
    %296 = vdwg.mxu0
    %vm297 = vcmask 130048
    %v299 = vsel %vm297, %v54, 0
    %v302 = vsel %vm297, %v55, 0
    %304 = vmatpush.msra.mxu0 0.0
    %305 = vmatpush.msra.mxu0 0.0
    %306 = vmatpush.msra.mxu0 0.0
    %307 = vmatpush.msra.mxu0 0.0
    %308 = vmatpush.msra.mxu0 0.0
    %309 = vmatpush.msra.mxu0 0.0
    %310 = vmatpush.msra.mxu0 0.0
    %311 = vmatpush.msra.mxu0 0.0
    %312 = vmatpush.msra.mxu0 0.0
    %313 = vmatpush.msra.mxu0 0.0
    %314 = vmatpush.msra.mxu0 0.0
    %315 = vmatpush.msra.mxu0 0.0
    %316 = vmatpush.msra.mxu0 0.0
    %317 = vmatpush.msra.mxu0 0.0
    %318 = vmatpush.msra.mxu0 %v135
    %319 = vmatpush.msra.mxu0 %v132
    %320 = vmatmul.f32.gmra.mxu0 %v299
    %v321 = vpop.f32.mrf.mxu0
    %v322 = vadd.f32 %v292, %v321
    %323 = vmatmul.f32.gmra.mxu0 %v302
    %v324 = vpop.f32.mrf.mxu0
    %v325 = vadd.f32 %v295, %v324
    %326 = vdwg.mxu0
    %v327 = vadd.f32 %v322, %v178
    %v328 = vadd.f32 %v325, %v181
    %v329 = vld [vmem:[%s7] sm:$0x1]
    %v331 = vperm.slane %v329, 0
    %v333 = vadd.f32 %v327, %v331
    %v334 = vadd.f32 %v328, %v331
    %v336 = vsel %vm297, %v56, 0
    %v339 = vsel %vm297, %v57, 0
    %v342 = vsel %vm297, %v58, 0
    %344 = vmatpush.msra.mxu0 0.0
    %345 = vmatpush.msra.mxu0 0.0
    %346 = vmatpush.msra.mxu0 0.0
    %347 = vmatpush.msra.mxu0 0.0
    %348 = vmatpush.msra.mxu0 0.0
    %349 = vmatpush.msra.mxu0 0.0
    %350 = vmatpush.msra.mxu0 0.0
    %351 = vmatpush.msra.mxu0 0.0
    %352 = vmatpush.msra.mxu0 0.0
    %353 = vmatpush.msra.mxu0 0.0
    %354 = vmatpush.msra.mxu0 0.0
    %355 = vmatpush.msra.mxu0 0.0
    %356 = vmatpush.msra.mxu0 0.0
    %357 = vmatpush.msra.mxu0 0.0
    %358 = vmatpush.msra.mxu0 %v158
    %359 = vmatpush.msra.mxu0 %v155
    %360 = vmatmul.f32.gmra.mxu0 %v336
    %v361 = vpop.f32.mrf.mxu0
    %v362 = vadd.f32 %v259, %v361
    %363 = vmatmul.f32.gmra.mxu0 %v339
    %v364 = vpop.f32.mrf.mxu0
    %v365 = vadd.f32 %v262, %v364
    %366 = vmatmul.f32.gmra.mxu0 %v342
    %v367 = vpop.f32.mrf.mxu0
    %v368 = vadd.f32 %v265, %v367
    %369 = vdwg.mxu0
    %v370 = vld [vmem:[%s8] sm:$0x1]
    %v372 = vperm.slane %v370, 0
    %v374 = vadd.f32 %v362, %v372
    %v375 = vadd.f32 %v365, %v372
    %v376 = vadd.f32 %v368, %v372
    %vm377 = vcmp.gt.f32.partialorder %v333, 0.0
    %vm378 = vcmp.gt.f32.partialorder %v334, 0.0
    %v379 = vmul.f32 %v333, 0.01
    %v380 = vmul.f32 %v334, 0.01
    %v381 = vsel %vm377, %v333, %v379
    %v382 = vsel %vm378, %v334, %v380
    %vm383 = vcmp.gt.f32.partialorder %v374, 0.0
    %vm384 = vcmp.gt.f32.partialorder %v375, 0.0
    %vm385 = vcmp.gt.f32.partialorder %v376, 0.0
    %v386 = vmul.f32 %v374, 0.01
    %v387 = vmul.f32 %v375, 0.01
    %v388 = vmul.f32 %v376, 0.01
    %v389 = vsel %vm383, %v374, %v386
    %v390 = vsel %vm384, %v375, %v387
    %v391 = vsel %vm385, %v376, %v388
    %v392 = vld [vmem:[%s9] sm:$0xff]
    %v393 = vld [vmem:[%s9 + $0x8] sm:$0xff]
    %v394 = vld [vmem:[%s9 + $0x10] sm:$0xff]
    %v395 = vld [vmem:[%s9 + $0x18] sm:$0xff]
    %v396 = vld [vmem:[%s9 + $0x20] sm:$0xff]
    %v397 = vld [vmem:[%s9 + $0x28] sm:$0xff]
    %v398 = vld [vmem:[%s9 + $0x30] sm:$0xff]
    %v399 = vld [vmem:[%s9 + $0x38] sm:$0xff]
    %v400 = vld [vmem:[%s9 + $0x40] sm:$0xff]
    %v401 = vld [vmem:[%s9 + $0x48] sm:$0xff]
    %v402 = vld [vmem:[%s9 + $0x50] sm:$0xff]
    %v403 = vld [vmem:[%s9 + $0x58] sm:$0xff]
    %v404 = vld [vmem:[%s9 + $0x60] sm:$0xff]
    %v405 = vld [vmem:[%s9 + $0x68] sm:$0xff]
    %v406 = vld [vmem:[%s9 + $0x70] sm:$0xff]
    %v407 = vld [vmem:[%s9 + $0x78] sm:$0xff]
    %v408 = vld [vmem:[%s9 + $0x80] sm:$0xff]
    %v409 = vld [vmem:[%s9 + $0x88] sm:$0xff]
    %v410 = vld [vmem:[%s9 + $0x90] sm:$0xff]
    %v411 = vld [vmem:[%s9 + $0x98] sm:$0xff]
    %v412 = vld [vmem:[%s9 + $0xa0] sm:$0xff]
    %v413 = vld [vmem:[%s9 + $0xa8] sm:$0xff]
    %v414 = vld [vmem:[%s9 + $0xb0] sm:$0xff]
    %v415 = vld [vmem:[%s9 + $0xb8] sm:$0xff]
    %v416 = vld [vmem:[%s9 + $0xc0] sm:$0xff]
    %v417 = vld [vmem:[%s9 + $0xc8] sm:$0xff]
    %v418 = vld [vmem:[%s9 + $0xd0] sm:$0xff]
    %v419 = vld [vmem:[%s9 + $0xd8] sm:$0xff]
    %v420 = vld [vmem:[%s9 + $0xe0] sm:$0xff]
    %v421 = vld [vmem:[%s9 + $0xe8] sm:$0xff]
    %v422 = vld [vmem:[%s9 + $0xf0] sm:$0xff]
    %v423 = vld [vmem:[%s9 + $0xf8] sm:$0xff]
    %v424 = vld [vmem:[%s9 + $0x100] sm:$0xff]
    %v425 = vld [vmem:[%s9 + $0x108] sm:$0xff]
    %v426 = vld [vmem:[%s9 + $0x110] sm:$0xff]
    %v427 = vld [vmem:[%s9 + $0x118] sm:$0xff]
    %v428 = vld [vmem:[%s9 + $0x120] sm:$0xff]
    %v429 = vld [vmem:[%s9 + $0x128] sm:$0xff]
    %v430 = vld [vmem:[%s9 + $0x130] sm:$0xff]
    %v431 = vld [vmem:[%s9 + $0x138] sm:$0xff]
    %v432 = vld [vmem:[%s9 + $0x140] sm:$0xff]
    %v433 = vld [vmem:[%s9 + $0x148] sm:$0xff]
    %v434 = vld [vmem:[%s9 + $0x150] sm:$0xff]
    %v435 = vld [vmem:[%s9 + $0x158] sm:$0xff]
    %v436 = vld [vmem:[%s9 + $0x160] sm:$0xff]
    %v437 = vld [vmem:[%s9 + $0x168] sm:$0xff]
    %v438 = vld [vmem:[%s9 + $0x170] sm:$0xff]
    %v439 = vld [vmem:[%s9 + $0x178] sm:$0xff]
    %440 = vmatpush.msra.mxu0 %v437
    %441 = vmatpush.msra.mxu0 %v434
    %442 = vmatpush.msra.mxu0 %v431
    %443 = vmatpush.msra.mxu0 %v428
    %444 = vmatpush.msra.mxu0 %v425
    %445 = vmatpush.msra.mxu0 %v422
    %446 = vmatpush.msra.mxu0 %v419
    %447 = vmatpush.msra.mxu0 %v416
    %448 = vmatpush.msra.mxu0 %v413
    %449 = vmatpush.msra.mxu0 %v410
    %450 = vmatpush.msra.mxu0 %v407
    %451 = vmatpush.msra.mxu0 %v404
    %452 = vmatpush.msra.mxu0 %v401
    %453 = vmatpush.msra.mxu0 %v398
    %454 = vmatpush.msra.mxu0 %v395
    %455 = vmatpush.msra.mxu0 %v392
    %456 = vmatmul.f32.gmra.mxu0 %v381
    %v457 = vpop.f32.mrf.mxu0
    %v458 = vadd.f32 0.0, %v457
    %459 = vmatmul.f32.gmra.mxu0 %v382
    %v460 = vpop.f32.mrf.mxu0
    %v461 = vadd.f32 0.0, %v460
    %462 = vdwg.mxu0
    %463 = vmatpush.msra.mxu0 %v438
    %464 = vmatpush.msra.mxu0 %v435
    %465 = vmatpush.msra.mxu0 %v432
    %466 = vmatpush.msra.mxu0 %v429
    %467 = vmatpush.msra.mxu0 %v426
    %468 = vmatpush.msra.mxu0 %v423
    %469 = vmatpush.msra.mxu0 %v420
    %470 = vmatpush.msra.mxu0 %v417
    %471 = vmatpush.msra.mxu0 %v414
    %472 = vmatpush.msra.mxu0 %v411
    %473 = vmatpush.msra.mxu0 %v408
    %474 = vmatpush.msra.mxu0 %v405
    %475 = vmatpush.msra.mxu0 %v402
    %476 = vmatpush.msra.mxu0 %v399
    %477 = vmatpush.msra.mxu0 %v396
    %478 = vmatpush.msra.mxu0 %v393
    %479 = vmatmul.f32.gmra.mxu0 %v381
    %v480 = vpop.f32.mrf.mxu0
    %v481 = vadd.f32 0.0, %v480
    %482 = vmatmul.f32.gmra.mxu0 %v382
    %v483 = vpop.f32.mrf.mxu0
    %v484 = vadd.f32 0.0, %v483
    %485 = vdwg.mxu0
    %486 = vmatpush.msra.mxu0 %v439
    %487 = vmatpush.msra.mxu0 %v436
    %488 = vmatpush.msra.mxu0 %v433
    %489 = vmatpush.msra.mxu0 %v430
    %490 = vmatpush.msra.mxu0 %v427
    %491 = vmatpush.msra.mxu0 %v424
    %492 = vmatpush.msra.mxu0 %v421
    %493 = vmatpush.msra.mxu0 %v418
    %494 = vmatpush.msra.mxu0 %v415
    %495 = vmatpush.msra.mxu0 %v412
    %496 = vmatpush.msra.mxu0 %v409
    %497 = vmatpush.msra.mxu0 %v406
    %498 = vmatpush.msra.mxu0 %v403
    %499 = vmatpush.msra.mxu0 %v400
    %500 = vmatpush.msra.mxu0 %v397
    %501 = vmatpush.msra.mxu0 %v394
    %502 = vmatmul.f32.gmra.mxu0 %v381
    %v503 = vpop.f32.mrf.mxu0
    %v504 = vadd.f32 0.0, %v503
    %505 = vmatmul.f32.gmra.mxu0 %v382
    %v506 = vpop.f32.mrf.mxu0
    %v507 = vadd.f32 0.0, %v506
    %508 = vdwg.mxu0
    %v509 = vld [vmem:[%s10] sm:$0xff]
    %v510 = vld [vmem:[%s10 + $0x8] sm:$0xff]
    %v511 = vld [vmem:[%s10 + $0x10] sm:$0xff]
    %v512 = vld [vmem:[%s10 + $0x18] sm:$0xff]
    %v513 = vld [vmem:[%s10 + $0x20] sm:$0xff]
    %v514 = vld [vmem:[%s10 + $0x28] sm:$0xff]
    %v515 = vld [vmem:[%s10 + $0x30] sm:$0xff]
    %v516 = vld [vmem:[%s10 + $0x38] sm:$0xff]
    %v517 = vld [vmem:[%s10 + $0x40] sm:$0xff]
    %v518 = vld [vmem:[%s10 + $0x48] sm:$0xff]
    %v519 = vld [vmem:[%s10 + $0x50] sm:$0xff]
    %v520 = vld [vmem:[%s10 + $0x58] sm:$0xff]
    %v521 = vld [vmem:[%s10 + $0x60] sm:$0xff]
    %v522 = vld [vmem:[%s10 + $0x68] sm:$0xff]
    %v523 = vld [vmem:[%s10 + $0x70] sm:$0xff]
    %v524 = vld [vmem:[%s10 + $0x78] sm:$0xff]
    %v525 = vld [vmem:[%s10 + $0x80] sm:$0xff]
    %v526 = vld [vmem:[%s10 + $0x88] sm:$0xff]
    %v527 = vld [vmem:[%s10 + $0x90] sm:$0xff]
    %v528 = vld [vmem:[%s10 + $0x98] sm:$0xff]
    %v529 = vld [vmem:[%s10 + $0xa0] sm:$0xff]
    %v530 = vld [vmem:[%s10 + $0xa8] sm:$0xff]
    %v531 = vld [vmem:[%s10 + $0xb0] sm:$0xff]
    %v532 = vld [vmem:[%s10 + $0xb8] sm:$0xff]
    %v533 = vld [vmem:[%s10 + $0xc0] sm:$0xff]
    %v534 = vld [vmem:[%s10 + $0xc8] sm:$0xff]
    %v535 = vld [vmem:[%s10 + $0xd0] sm:$0xff]
    %v536 = vld [vmem:[%s10 + $0xd8] sm:$0xff]
    %v537 = vld [vmem:[%s10 + $0xe0] sm:$0xff]
    %v538 = vld [vmem:[%s10 + $0xe8] sm:$0xff]
    %v539 = vld [vmem:[%s10 + $0xf0] sm:$0xff]
    %v540 = vld [vmem:[%s10 + $0xf8] sm:$0xff]
    %541 = vmatpush.msra.mxu0 %v539
    %542 = vmatpush.msra.mxu0 %v537
    %543 = vmatpush.msra.mxu0 %v535
    %544 = vmatpush.msra.mxu0 %v533
    %545 = vmatpush.msra.mxu0 %v531
    %546 = vmatpush.msra.mxu0 %v529
    %547 = vmatpush.msra.mxu0 %v527
    %548 = vmatpush.msra.mxu0 %v525
    %549 = vmatpush.msra.mxu0 %v523
    %550 = vmatpush.msra.mxu0 %v521
    %551 = vmatpush.msra.mxu0 %v519
    %552 = vmatpush.msra.mxu0 %v517
    %553 = vmatpush.msra.mxu0 %v515
    %554 = vmatpush.msra.mxu0 %v513
    %555 = vmatpush.msra.mxu0 %v511
    %556 = vmatpush.msra.mxu0 %v509
    %557 = vmatmul.f32.gmra.mxu0 %v389
    %v558 = vpop.f32.mrf.mxu0
    %v559 = vadd.f32 0.0, %v558
    %560 = vmatmul.f32.gmra.mxu0 %v390
    %v561 = vpop.f32.mrf.mxu0
    %v562 = vadd.f32 0.0, %v561
    %563 = vmatmul.f32.gmra.mxu0 %v391
    %v564 = vpop.f32.mrf.mxu0
    %v565 = vadd.f32 0.0, %v564
    %566 = vdwg.mxu0
    %567 = vmatpush.msra.mxu0 %v540
    %568 = vmatpush.msra.mxu0 %v538
    %569 = vmatpush.msra.mxu0 %v536
    %570 = vmatpush.msra.mxu0 %v534
    %571 = vmatpush.msra.mxu0 %v532
    %572 = vmatpush.msra.mxu0 %v530
    %573 = vmatpush.msra.mxu0 %v528
    %574 = vmatpush.msra.mxu0 %v526
    %575 = vmatpush.msra.mxu0 %v524
    %576 = vmatpush.msra.mxu0 %v522
    %577 = vmatpush.msra.mxu0 %v520
    %578 = vmatpush.msra.mxu0 %v518
    %579 = vmatpush.msra.mxu0 %v516
    %580 = vmatpush.msra.mxu0 %v514
    %581 = vmatpush.msra.mxu0 %v512
    %582 = vmatpush.msra.mxu0 %v510
    %583 = vmatmul.f32.gmra.mxu0 %v389
    %v584 = vpop.f32.mrf.mxu0
    %v585 = vadd.f32 0.0, %v584
    %586 = vmatmul.f32.gmra.mxu0 %v390
    %v587 = vpop.f32.mrf.mxu0
    %v588 = vadd.f32 0.0, %v587
    %589 = vmatmul.f32.gmra.mxu0 %v391
    %v590 = vpop.f32.mrf.mxu0
    %v591 = vadd.f32 0.0, %v590
    %592 = vdwg.mxu0
    %593 = vmatpush.msra.mxu0 0.0
    %594 = vmatpush.msra.mxu0 0.0
    %595 = vmatpush.msra.mxu0 0.0
    %596 = vmatpush.msra.mxu0 0.0
    %597 = vmatpush.msra.mxu0 0.0
    %598 = vmatpush.msra.mxu0 0.0
    %599 = vmatpush.msra.mxu0 0.0
    %600 = vmatpush.msra.mxu0 0.0
    %601 = vmatpush.msra.mxu0 0.0
    %602 = vmatpush.msra.mxu0 0.0
    %603 = vmatpush.msra.mxu0 0.0
    %604 = vmatpush.msra.mxu0 0.0
    %605 = vmatpush.msra.mxu0 0.0
    %606 = vmatpush.msra.mxu0 %v565
    %607 = vmatpush.msra.mxu0 %v562
    %608 = vmatpush.msra.mxu0 %v559
    %609 = vmatmul.f32.gmra.mxu0 %v269
    %v610 = vpop.f32.mrf.mxu0
    %v611 = vadd.f32 0.0, %v610
    %612 = vmatmul.f32.gmra.mxu0 %v272
    %v613 = vpop.f32.mrf.mxu0
    %v614 = vadd.f32 0.0, %v613
    %615 = vdwg.mxu0
    %616 = vmatpush.msra.mxu0 0.0
    %617 = vmatpush.msra.mxu0 0.0
    %618 = vmatpush.msra.mxu0 0.0
    %619 = vmatpush.msra.mxu0 0.0
    %620 = vmatpush.msra.mxu0 0.0
    %621 = vmatpush.msra.mxu0 0.0
    %622 = vmatpush.msra.mxu0 0.0
    %623 = vmatpush.msra.mxu0 0.0
    %624 = vmatpush.msra.mxu0 0.0
    %625 = vmatpush.msra.mxu0 0.0
    %626 = vmatpush.msra.mxu0 0.0
    %627 = vmatpush.msra.mxu0 0.0
    %628 = vmatpush.msra.mxu0 0.0
    %629 = vmatpush.msra.mxu0 0.0
    %630 = vmatpush.msra.mxu0 %v461
    %631 = vmatpush.msra.mxu0 %v458
    %632 = vmatmul.f32.gmra.mxu0 %v299
    %v633 = vpop.f32.mrf.mxu0
    %v634 = vadd.f32 %v611, %v633
    %635 = vmatmul.f32.gmra.mxu0 %v302
    %v636 = vpop.f32.mrf.mxu0
    %v637 = vadd.f32 %v614, %v636
    %638 = vdwg.mxu0
    %v639 = vadd.f32 %v634, %v504
    %v640 = vadd.f32 %v637, %v507
    %v641 = vld [vmem:[%s11] sm:$0x1]
    %v643 = vperm.slane %v641, 0
    %v645 = vadd.f32 %v639, %v643
    %v646 = vadd.f32 %v640, %v643
    %647 = vmatpush.msra.mxu0 0.0
    %648 = vmatpush.msra.mxu0 0.0
    %649 = vmatpush.msra.mxu0 0.0
    %650 = vmatpush.msra.mxu0 0.0
    %651 = vmatpush.msra.mxu0 0.0
    %652 = vmatpush.msra.mxu0 0.0
    %653 = vmatpush.msra.mxu0 0.0
    %654 = vmatpush.msra.mxu0 0.0
    %655 = vmatpush.msra.mxu0 0.0
    %656 = vmatpush.msra.mxu0 0.0
    %657 = vmatpush.msra.mxu0 0.0
    %658 = vmatpush.msra.mxu0 0.0
    %659 = vmatpush.msra.mxu0 0.0
    %660 = vmatpush.msra.mxu0 0.0
    %661 = vmatpush.msra.mxu0 %v484
    %662 = vmatpush.msra.mxu0 %v481
    %663 = vmatmul.f32.gmra.mxu0 %v336
    %v664 = vpop.f32.mrf.mxu0
    %v665 = vadd.f32 %v585, %v664
    %666 = vmatmul.f32.gmra.mxu0 %v339
    %v667 = vpop.f32.mrf.mxu0
    %v668 = vadd.f32 %v588, %v667
    %669 = vmatmul.f32.gmra.mxu0 %v342
    %v670 = vpop.f32.mrf.mxu0
    %v671 = vadd.f32 %v591, %v670
    %672 = vdwg.mxu0
    %v673 = vld [vmem:[%s12] sm:$0x1]
    %v675 = vperm.slane %v673, 0
    %v677 = vadd.f32 %v665, %v675
    %v678 = vadd.f32 %v668, %v675
    %v679 = vadd.f32 %v671, %v675
    %vm680 = vcmp.gt.f32.partialorder %v645, 0.0
    %vm681 = vcmp.gt.f32.partialorder %v646, 0.0
    %v682 = vmul.f32 %v645, 0.01
    %v683 = vmul.f32 %v646, 0.01
    %v684 = vsel %vm680, %v645, %v682
    %v685 = vsel %vm681, %v646, %v683
    %vm686 = vcmp.gt.f32.partialorder %v677, 0.0
    %vm687 = vcmp.gt.f32.partialorder %v678, 0.0
    %vm688 = vcmp.gt.f32.partialorder %v679, 0.0
    %v689 = vmul.f32 %v677, 0.01
    %v690 = vmul.f32 %v678, 0.01
    %v691 = vmul.f32 %v679, 0.01
    %v692 = vsel %vm686, %v677, %v689
    %v693 = vsel %vm687, %v678, %v690
    %v694 = vsel %vm688, %v679, %v691
    %v695 = vld [vmem:[%s13] sm:$0x1]
    %v696 = vld [vmem:[%s14] sm:$0x1]
    %v697 = vlaneseq
    %v698 = vshrl.u32 %v697, 7
    %v699 = vadd.s32 %v698, 8
    %vm700 = vcmp.lt.s32.totalorder %v698, 16
    %vm701 = vcmp.lt.s32.totalorder %v699, 16
    %v702 = vsel %vm700, %v684, 0.0
    %v703 = vsel %vm701, %v685, 0.0
    %v704 = vadd.f32 %v702, %v703
    %v705 = vrot.slane %v704, 4
    %v706 = vadd.f32 %v704, %v705
    %v707 = vrot.slane %v706, 2
    %v708 = vadd.f32 %v706, %v707
    %v709 = vrot.slane %v708, 1
    %v710 = vadd.f32 %v708, %v709
    %v711 = vmul.f32 %v710, 0.0625
    %v712 = vmul.f32 %v702, %v702
    %v713 = vmul.f32 %v703, %v703
    %v714 = vadd.f32 %v712, %v713
    %v715 = vrot.slane %v714, 4
    %v716 = vadd.f32 %v714, %v715
    %v717 = vrot.slane %v716, 2
    %v718 = vadd.f32 %v716, %v717
    %v719 = vrot.slane %v718, 1
    %v720 = vadd.f32 %v718, %v719
    %v721 = vmul.f32 %v720, 0.0625
    %v722 = vmul.f32 %v711, %v711
    %v723 = vsub.f32 %v721, %v722
    %v724 = vmax.f32 %v723, 0.0
    %v725 = vadd.f32 %v724, 1e-05
    %v726 = vrsqrt.pop %v725
    %v727 = vmul.f32 %v726, %v725
    %v728 = vmul.f32 %v727, %v726
    %v729 = vmul.f32 0.5, %v728
    %v730 = vsub.f32 1.5, %v729
    %v731 = vmul.f32 %v726, %v730
    %vm732 = vweird.f32 %v725
    %vm733 = vweird.f32 %v726
    %vm734 = vmor %vm732, %vm733
    %v735 = vsel %vm734, %v726, %v731
    %v736 = vsub.f32 %v684, %v711
    %v737 = vsub.f32 %v685, %v711
    %v738 = vmul.f32 %v735, %v695
    %v739 = vperm.slane %v738, 0
    %v740 = vmul.f32 %v736, %v739
    %v741 = vmul.f32 %v737, %v739
    %v743 = vperm.slane %v696, 0
    %v745 = vadd.f32 %v740, %v743
    %v746 = vadd.f32 %v741, %v743
    %747 = vst [vmem:[#allocation2] sm:$0xff] %v745
    %748 = vst [vmem:[#allocation2 + $0x8] sm:$0xff] %v746
    %v749 = vadd.s32 %v698, 16
    %vm750 = vcmp.lt.s32.totalorder %v698, 24
    %vm751 = vcmp.lt.s32.totalorder %v699, 24
    %vm752 = vcmp.lt.s32.totalorder %v749, 24
    %v753 = vsel %vm750, %v692, 0.0
    %v754 = vsel %vm751, %v693, 0.0
    %v755 = vsel %vm752, %v694, 0.0
    %v756 = vadd.f32 %v753, %v754
    %v757 = vadd.f32 %v756, %v755
    %v758 = vrot.slane %v757, 4
    %v759 = vadd.f32 %v757, %v758
    %v760 = vrot.slane %v759, 2
    %v761 = vadd.f32 %v759, %v760
    %v762 = vrot.slane %v761, 1
    %v763 = vadd.f32 %v761, %v762
    %v764 = vmul.f32 %v763, 0.041666668
    %v765 = vmul.f32 %v753, %v753
    %v766 = vmul.f32 %v754, %v754
    %v767 = vmul.f32 %v755, %v755
    %v768 = vadd.f32 %v765, %v766
    %v769 = vadd.f32 %v768, %v767
    %v770 = vrot.slane %v769, 4
    %v771 = vadd.f32 %v769, %v770
    %v772 = vrot.slane %v771, 2
    %v773 = vadd.f32 %v771, %v772
    %v774 = vrot.slane %v773, 1
    %v775 = vadd.f32 %v773, %v774
    %v776 = vmul.f32 %v775, 0.041666668
    %v777 = vmul.f32 %v764, %v764
    %v778 = vsub.f32 %v776, %v777
    %v779 = vmax.f32 %v778, 0.0
    %v780 = vadd.f32 %v779, 1e-05
    %v781 = vrsqrt.pop %v780
    %v782 = vmul.f32 %v781, %v780
    %v783 = vmul.f32 %v782, %v781
    %v784 = vmul.f32 0.5, %v783
    %v785 = vsub.f32 1.5, %v784
    %v786 = vmul.f32 %v781, %v785
    %vm787 = vweird.f32 %v780
    %vm788 = vweird.f32 %v781
    %vm789 = vmor %vm787, %vm788
    %v790 = vsel %vm789, %v781, %v786
    %v791 = vsub.f32 %v692, %v764
    %v792 = vsub.f32 %v693, %v764
    %v793 = vsub.f32 %v694, %v764
    %v794 = vmul.f32 %v790, %v695
    %v795 = vperm.slane %v794, 0
    %v796 = vmul.f32 %v791, %v795
    %v797 = vmul.f32 %v792, %v795
    %v798 = vmul.f32 %v793, %v795
    %v799 = vadd.f32 %v796, %v743
    %v800 = vadd.f32 %v797, %v743
    %v801 = vadd.f32 %v798, %v743
    %802 = vst [vmem:[#allocation4] sm:$0xff] %v799
    %803 = vst [vmem:[#allocation4 + $0x8] sm:$0xff] %v800
    %804 = vst [vmem:[#allocation4 + $0x10] sm:$0xff] %v801
    // Predicated region
    $region62: #{hetero_gnn_forward.1} parent=1 // pred_check
      _
    $region63: #{hetero_gnn_forward.1} parent=1 // pred_check_branch
      %806 = sbr.rel (0) target = $region65
    $region64: #{hetero_gnn_forward.1} parent=1 // pred_region
      %808 = vsyncadd [#allocation3], 0
      %s809 = sshll.u32 [#allocation2], 4
      %s810 = int_to_ptr.vmem [resolvable:$true] %s809
      %s811 = sshll.u32 %s15, 4
      %s812 = int_to_ptr.hbm [resolvable:$true] %s811
      %817 = dma.vmem_to_hbm [thread:$0]  %s810, 256, %s812, [#allocation3], 128, 128, 8
    $region65: #{hetero_gnn_forward.1} parent=1 // pred_fallthru
      _
    // Predicated region
    $region66: #{hetero_gnn_forward.1} parent=1 // pred_check
      _
    $region67: #{hetero_gnn_forward.1} parent=1 // pred_check_branch
      %819 = sbr.rel (0) target = $region69
    $region68: #{hetero_gnn_forward.1} parent=1 // pred_region
      %821 = vsyncadd [#allocation5], 0
      %s822 = sshll.u32 [#allocation4], 4
      %s823 = int_to_ptr.vmem [resolvable:$true] %s822
      %s824 = sshll.u32 %s16, 4
      %s825 = int_to_ptr.hbm [resolvable:$true] %s824
      %830 = dma.vmem_to_hbm [thread:$0]  %s823, 384, %s825, [#allocation5], 128, 128, 8
    $region69: #{hetero_gnn_forward.1} parent=1 // pred_fallthru
      _
    // Predicated region
    $region70: #{hetero_gnn_forward.1} parent=1 // pred_check
      _
    $region71: #{hetero_gnn_forward.1} parent=1 // pred_check_branch
      %832 = sbr.rel (0) target = $region73
    $region72: #{hetero_gnn_forward.1} parent=1 // pred_region
      %834 = dma.done [#allocation3], 256
    $region73: #{hetero_gnn_forward.1} parent=1 // pred_fallthru
      _
    // Predicated region
    $region74: #{hetero_gnn_forward.1} parent=1 // pred_check
      _
    $region75: #{hetero_gnn_forward.1} parent=1 // pred_check_branch
      %836 = sbr.rel (0) target = $region77
    $region76: #{hetero_gnn_forward.1} parent=1 // pred_region
      %838 = dma.done [#allocation5], 384
    $region77: #{hetero_gnn_forward.1} parent=1 // pred_fallthru
      _
    %839 = vsyncpa [#allocation3], 1
    %840 = vsyncpa [#allocation5], 1

</llo_original>
